<compile_context>
chip_gen: v7x
topology: tpu7x:2x2x1
jax: 0.10.0
libtpu: 0.0.40
codegen_flags: <defaults>
</compile_context>

<pallas_src>
import functools

import jax
import jax.numpy as jnp
from jax import lax
from jax.experimental import pallas as pl
from jax.experimental.pallas import tpu as pltpu

EPS = 1e-5
NEG_SLOPE = 0.2
K = 4
PAD = 1
LANE = 128          # lane width: pad CK / C_out to multiples of this
TP_ALIGN = 16       # P-tile granularity (bf16 sublane packing)
VMEM_LIMIT = 32 * 1024 * 1024


def _round_up(x, m):
    return (x + m - 1) // m * m


def _choose_tile_p(p, ck_pad, c_pad):
    # Keep double-buffered bf16 patch tiles + f32 y/out tiles comfortably inside the
    # scoped-VMEM defaults (16 MiB v5e, 32 MiB v6e/v7x; v7x has only 64 MiB physical).
    budget = 8 * 1024 * 1024
    per_row = 2 * (ck_pad * 2 + 2 * c_pad * 4)   # 2x buffers; bf16 patches, f32 y + out
    tp = max(TP_ALIGN, min(1024, budget // per_row))
    tp = (tp // TP_ALIGN) * TP_ALIGN
    return int(min(tp, _round_up(p, TP_ALIGN)))


# ---------------------------------------------------------------------------
# Pass 1: conv tile (bf16 MXU operands, f32 accumulation) + per-channel stats.
# ---------------------------------------------------------------------------
def _conv_stats_kernel(x_ref, w_ref, y_ref, stats_ref):
    # x_ref:     (TP, CK_pad)     bf16 im2col patches for this tile
    # w_ref:     (CK_pad, C_pad)  bf16 conv weight as matmul operand (resident)
    # y_ref:     (TP, C_pad)      f32 conv output tile
    # stats_ref: (2, C_pad)       f32 [sum; sum_of_squares], resident across the P axis
    y = jnp.dot(x_ref[...], w_ref[...], preferred_element_type=jnp.float32)
    y_ref[...] = y

    s = jnp.sum(y, axis=0, keepdims=True)           # (1, C_pad)
    ss = jnp.sum(y * y, axis=0, keepdims=True)      # (1, C_pad)
    tile_stats = jnp.concatenate([s, ss], axis=0)   # (2, C_pad)

    @pl.when(pl.program_id(1) == 0)
    def _init():
        stats_ref[...] = tile_stats

    @pl.when(pl.program_id(1) != 0)
    def _accum():
        stats_ref[...] += tile_stats


# ---------------------------------------------------------------------------
# Pass 2: (y - mean) * rsqrt(var + eps) -> LeakyReLU(0.2). Purely elementwise.
# ---------------------------------------------------------------------------
def _norm_lrelu_kernel(y_ref, stats_ref, o_ref, *, inv_p):
    y = y_ref[...]                                   # (TP, C_pad) f32
    stats = stats_ref[...]                           # (2, C_pad)  f32
    mean = stats[0:1, :] * inv_p                     # (1, C_pad)
    var = jnp.maximum(stats[1:2, :] * inv_p - mean * mean, 0.0)
    rstd = lax.rsqrt(var + EPS)                      # EUP slot
    d = (y - mean) * rstd
    o_ref[...] = jnp.where(d >= 0, d, NEG_SLOPE * d).astype(o_ref.dtype)


# ---------------------------------------------------------------------------
# JAX-side glue: reflect padding + im2col (feature order ci*K*K + ki*K + kj).
# ---------------------------------------------------------------------------
def _im2col(x_pad, stride, h_out, w_out):
    n, c, _, _ = x_pad.shape
    cols = []
    for ki in range(K):
        for kj in range(K):
            cols.append(
                x_pad[:, :, ki:ki + stride * h_out:stride, kj:kj + stride * w_out:stride]
            )
    p = jnp.stack(cols, axis=2)                      # (N, C, K*K, H_out, W_out)
    p = p.reshape(n, c * K * K, h_out * w_out)       # (N, CK, P)
    return p.transpose(0, 2, 1)                      # (N, P, CK)


def block_forward(x, weight, bias, stride):
    """Forward of `Block`. x: (N, C_in, H, W); weight: (C_out, C_in, 4, 4); bias: (C_out,).

    `bias` is accepted for interface parity but is never added: InstanceNorm2d
    (affine=False) removes any per-channel constant, so the output is identical.
    """
    del bias
    n, c_in, h, w = x.shape
    c_out = weight.shape[0]

    h_out = (h + 2 * PAD - K) // stride + 1
    w_out = (w + 2 * PAD - K) // stride + 1
    p = h_out * w_out
    ck = c_in * K * K

    ck_pad = _round_up(ck, LANE)
    c_pad = _round_up(c_out, LANE)
    tp = _choose_tile_p(p, ck_pad, c_pad)
    p_pad = _round_up(p, tp)
    n_pt = p_pad // tp

    # Reflect pad + im2col in bf16 (padded rows/cols are zero -> contribute nothing to
    # the matmul or to the sum / sum-of-squares; stats divide by the true P).
    x_pad = jnp.pad(x, ((0, 0), (0, 0), (PAD, PAD), (PAD, PAD)), mode="reflect")
    patches = _im2col(x_pad.astype(jnp.bfloat16), stride, h_out, w_out)   # (N, P, CK)
    patches = jnp.pad(patches, ((0, 0), (0, p_pad - p), (0, ck_pad - ck)))

    w_mat = weight.reshape(c_out, ck).T.astype(jnp.bfloat16)              # (CK, C_out)
    w_mat = jnp.pad(w_mat, ((0, ck_pad - ck), (0, c_pad - c_out)))

    # ---- pass 1: conv + running per-channel sum / sum-of-squares -----------------
    y, stats = pl.pallas_call(
        _conv_stats_kernel,
        out_shape=(
            jax.ShapeDtypeStruct((n, p_pad, c_pad), jnp.float32),
            jax.ShapeDtypeStruct((n, 2, c_pad), jnp.float32),
        ),
        grid_spec=pltpu.PrefetchScalarGridSpec(
            num_scalar_prefetch=0,
            grid=(n, n_pt),
            in_specs=[
                # None == pl.Squeezed(): batch dim dropped from the kernel ref.
                pl.BlockSpec((None, tp, ck_pad), lambda b, t: (b, t, 0)),
                pl.BlockSpec((ck_pad, c_pad), lambda b, t: (0, 0)),
            ],
            out_specs=[
                pl.BlockSpec((None, tp, c_pad), lambda b, t: (b, t, 0)),
                pl.BlockSpec((None, 2, c_pad), lambda b, t: (b, 0, 0)),  # accumulator
            ],
        ),
        compiler_params=pltpu.CompilerParams(
            dimension_semantics=("parallel", "arbitrary"),
            vmem_limit_bytes=VMEM_LIMIT,
        ),
    )(patches, w_mat)

    # ---- pass 2: normalize + LeakyReLU (fully parallel grid) ---------------------
    out = pl.pallas_call(
        functools.partial(_norm_lrelu_kernel, inv_p=1.0 / p),
        out_shape=jax.ShapeDtypeStruct((n, p_pad, c_pad), x.dtype),
        grid_spec=pltpu.PrefetchScalarGridSpec(
            num_scalar_prefetch=0,
            grid=(n, n_pt),
            in_specs=[
                pl.BlockSpec((None, tp, c_pad), lambda b, t: (b, t, 0)),
                pl.BlockSpec((None, 2, c_pad), lambda b, t: (b, 0, 0)),
            ],
            out_specs=pl.BlockSpec((None, tp, c_pad), lambda b, t: (b, t, 0)),
        ),
        compiler_params=pltpu.CompilerParams(
            dimension_semantics=("parallel", "parallel"),
            vmem_limit_bytes=VMEM_LIMIT,
        ),
    )(y, stats)

    # Strip padding; convert (N, P, C) -> NCHW only at the module boundary (a full
    # discriminator would keep the lane-dense (N, P, C) layout between Blocks).
    out = out[:, :p, :c_out].reshape(n, h_out, w_out, c_out)
    return out.transpose(0, 3, 1, 2)


def block_reference(x, weight, bias, stride):
    # Pure-JAX reference. Conv operands are cast to bf16 (f32 accumulation) to mirror
    # the kernel's intentional MXU precision; the bias IS added here, which also
    # validates that dropping it in the kernel is exact under InstanceNorm.
    x_pad = jnp.pad(x, ((0, 0), (0, 0), (PAD, PAD), (PAD, PAD)), mode="reflect")
    y = lax.conv_general_dilated(
        x_pad.astype(jnp.bfloat16), weight.astype(jnp.bfloat16),
        window_strides=(stride, stride), padding="VALID",
        dimension_numbers=("NCHW", "OIHW", "NCHW"),
        preferred_element_type=jnp.float32,
    ) + bias.reshape(1, -1, 1, 1)
    mean = jnp.mean(y, axis=(2, 3), keepdims=True)
    var = jnp.mean((y - mean) ** 2, axis=(2, 3), keepdims=True)
    yn = (y - mean) * lax.rsqrt(var + EPS)
    return jnp.where(yn >= 0, yn, NEG_SLOPE * yn).astype(x.dtype)


if __name__ == "__main__":
    key = jax.random.PRNGKey(0)
    k_x, k_w, k_b = jax.random.split(key, 3)

    n, c_in, h, w = 2, 4, 16, 16
    c_out, stride = 8, 2

    x = jax.random.normal(k_x, (n, c_in, h, w), dtype=jnp.float32)
    weight = jax.random.normal(k_w, (c_out, c_in, K, K), dtype=jnp.float32) * 0.1
    bias = jax.random.normal(k_b, (c_out,), dtype=jnp.float32) * 0.1

    fwd = jax.jit(block_forward, static_argnames=("stride",))
    out = jax.block_until_ready(fwd(x, weight, bias, stride=stride))

    ref = jax.block_until_ready(block_reference(x, weight, bias, stride))
    assert out.shape == (n, c_out, 8, 8), out.shape
    err = float(jnp.max(jnp.abs(out - ref)))
    assert err < 2e-3, err

    print("KERNEL_OK")
</pallas_src>

<mosaic_0001>
module attributes {stable_mosaic.version = 11 : i64} {
  func.func @_conv_stats_kernel(%arg0: i32, %arg1: i32, %arg2: memref<1x64x128xbf16, #tpu.memory_space<vmem>>, %arg3: memref<128x128xbf16, #tpu.memory_space<vmem>>, %arg4: memref<1x64x128xf32, #tpu.memory_space<vmem>>, %arg5: memref<1x2x128xf32, #tpu.memory_space<vmem>>) attributes {dimension_semantics = [#tpu.dimension_semantics<parallel>, #tpu.dimension_semantics<arbitrary>], iteration_bounds = array<i64: 2, 1>, scalar_prefetch = 0 : i64, scratch_operands = 0 : i64, tpu.core_type = #tpu.core_type<tc>, window_params = [{transform_indices = @transform_0, window_bounds = array<i64: 1, 64, 128>}, {pipeline_mode = #tpu.pipeline_mode<synchronous>, transform_indices = @transform_1, window_bounds = array<i64: 128, 128>}, {transform_indices = @transform_2, window_bounds = array<i64: 1, 64, 128>}, {transform_indices = @transform_3, window_bounds = array<i64: 1, 2, 128>}]} {
    %c0 = arith.constant 0 : index
    %c0_0 = arith.constant 0 : index
    %c0_1 = arith.constant 0 : index
    %0 = vector.load %arg2[%c0, %c0_0, %c0_1] : memref<1x64x128xbf16, #tpu.memory_space<vmem>>, vector<1x64x128xbf16>
    %1 = vector.shape_cast %0 : vector<1x64x128xbf16> to vector<64x128xbf16>
    %c0_2 = arith.constant 0 : index
    %c0_3 = arith.constant 0 : index
    %2 = vector.load %arg3[%c0_2, %c0_3] : memref<128x128xbf16, #tpu.memory_space<vmem>>, vector<128x128xbf16>
    %cst = arith.constant dense<0.000000e+00> : vector<64x128xf32>
    %3 = tpu.matmul %1, %2, %cst {dimension_numbers = #tpu.dot_dimension_numbers<[1], [0], [0], [1], [0, 0, 1, 1], [], []>} : vector<64x128xbf16>, vector<128x128xbf16>, vector<64x128xf32> -> vector<64x128xf32>
    %c0_4 = arith.constant 0 : index
    %c0_5 = arith.constant 0 : index
    %c0_6 = arith.constant 0 : index
    %4 = vector.load %arg4[%c0_4, %c0_5, %c0_6] : memref<1x64x128xf32, #tpu.memory_space<vmem>>, vector<1x64x128xf32>
    %5 = vector.shape_cast %4 : vector<1x64x128xf32> to vector<64x128xf32>
    %6 = vector.shape_cast %3 : vector<64x128xf32> to vector<1x64x128xf32>
    tpu.vector_store %arg4[%c0_4, %c0_5, %c0_6], %6 {strides = array<i32>} : memref<1x64x128xf32, #tpu.memory_space<vmem>>, vector<1x64x128xf32>,
    %cst_7 = arith.constant dense<0.000000e+00> : vector<128xf32>
    %7 = vector.multi_reduction <add>, %3, %cst_7 [0] : vector<64x128xf32> to vector<128xf32>
    %8 = vector.shape_cast %7 : vector<128xf32> to vector<1x128xf32>
    %9 = arith.mulf %3, %3 : vector<64x128xf32>
    %cst_8 = arith.constant dense<0.000000e+00> : vector<128xf32>
    %10 = vector.multi_reduction <add>, %9, %cst_8 [0] : vector<64x128xf32> to vector<128xf32>
    %11 = vector.shape_cast %10 : vector<128xf32> to vector<1x128xf32>
    %12 = tpu.concatenate %8, %11 in 0 : vector<1x128xf32>, vector<1x128xf32> -> vector<2x128xf32>
    %c0_i32 = arith.constant 0 : i32
    %13 = arith.cmpi eq, %arg1, %c0_i32 : i32
    %14 = arith.extui %13 : i1 to i32
    %c0_i32_9 = arith.constant 0 : i32
    %15 = arith.cmpi ne, %14, %c0_i32_9 : i32
    scf.if %15 {
      %c0_12 = arith.constant 0 : index
      %c0_13 = arith.constant 0 : index
      %c0_14 = arith.constant 0 : index
      %19 = vector.load %arg5[%c0_12, %c0_13, %c0_14] : memref<1x2x128xf32, #tpu.memory_space<vmem>>, vector<1x2x128xf32>
      %20 = vector.shape_cast %19 : vector<1x2x128xf32> to vector<2x128xf32>
      %21 = vector.shape_cast %12 : vector<2x128xf32> to vector<1x2x128xf32>
      tpu.vector_store %arg5[%c0_12, %c0_13, %c0_14], %21 {strides = array<i32>} : memref<1x2x128xf32, #tpu.memory_space<vmem>>, vector<1x2x128xf32>,
    } else {
    }
    %c0_i32_10 = arith.constant 0 : i32
    %16 = arith.cmpi ne, %arg1, %c0_i32_10 : i32
    %17 = arith.extui %16 : i1 to i32
    %c0_i32_11 = arith.constant 0 : i32
    %18 = arith.cmpi ne, %17, %c0_i32_11 : i32
    scf.if %18 {
      %c0_12 = arith.constant 0 : index
      %c0_13 = arith.constant 0 : index
      %c0_14 = arith.constant 0 : index
      %19 = vector.load %arg5[%c0_12, %c0_13, %c0_14] : memref<1x2x128xf32, #tpu.memory_space<vmem>>, vector<1x2x128xf32>
      %20 = vector.shape_cast %19 : vector<1x2x128xf32> to vector<2x128xf32>
      %21 = arith.addf %20, %12 : vector<2x128xf32>
      %c0_15 = arith.constant 0 : index
      %c0_16 = arith.constant 0 : index
      %c0_17 = arith.constant 0 : index
      %22 = vector.load %arg5[%c0_15, %c0_16, %c0_17] : memref<1x2x128xf32, #tpu.memory_space<vmem>>, vector<1x2x128xf32>
      %23 = vector.shape_cast %22 : vector<1x2x128xf32> to vector<2x128xf32>
      %24 = vector.shape_cast %21 : vector<2x128xf32> to vector<1x2x128xf32>
      tpu.vector_store %arg5[%c0_15, %c0_16, %c0_17], %24 {strides = array<i32>} : memref<1x2x128xf32, #tpu.memory_space<vmem>>, vector<1x2x128xf32>,
    } else {
    }
    return
  }
  func.func @transform_0(%arg0: i32, %arg1: i32) -> (i32, i32, i32) {
    %c0_i32 = arith.constant 0 : i32
    %c0_i32_0 = arith.constant 0 : i32
    return %arg0, %arg1, %c0_i32 : i32, i32, i32
  }
  func.func @transform_1(%arg0: i32, %arg1: i32) -> (i32, i32) {
    %c0_i32 = arith.constant 0 : i32
    %c0_i32_0 = arith.constant 0 : i32
    %c0_i32_1 = arith.constant 0 : i32
    return %c0_i32, %c0_i32_0 : i32, i32
  }
  func.func @transform_2(%arg0: i32, %arg1: i32) -> (i32, i32, i32) {
    %c0_i32 = arith.constant 0 : i32
    %c0_i32_0 = arith.constant 0 : i32
    return %arg0, %arg1, %c0_i32 : i32, i32, i32
  }
  func.func @transform_3(%arg0: i32, %arg1: i32) -> (i32, i32, i32) {
    %c0_i32 = arith.constant 0 : i32
    %c0_i32_0 = arith.constant 0 : i32
    %c0_i32_1 = arith.constant 0 : i32
    return %arg0, %c0_i32, %c0_i32_0 : i32, i32, i32
  }
}

module attributes {stable_mosaic.version = 11 : i64} {
  func.func @_norm_lrelu_kernel(%arg0: i32, %arg1: i32, %arg2: memref<1x64x128xf32, #tpu.memory_space<vmem>>, %arg3: memref<1x2x128xf32, #tpu.memory_space<vmem>>, %arg4: memref<1x64x128xf32, #tpu.memory_space<vmem>>) attributes {dimension_semantics = [#tpu.dimension_semantics<parallel>, #tpu.dimension_semantics<parallel>], iteration_bounds = array<i64: 2, 1>, scalar_prefetch = 0 : i64, scratch_operands = 0 : i64, tpu.core_type = #tpu.core_type<tc>, window_params = [{transform_indices = @transform_0, window_bounds = array<i64: 1, 64, 128>}, {transform_indices = @transform_1, window_bounds = array<i64: 1, 2, 128>}, {transform_indices = @transform_2, window_bounds = array<i64: 1, 64, 128>}]} {
    %c0 = arith.constant 0 : index
    %c0_0 = arith.constant 0 : index
    %c0_1 = arith.constant 0 : index
    %0 = vector.load %arg2[%c0, %c0_0, %c0_1] : memref<1x64x128xf32, #tpu.memory_space<vmem>>, vector<1x64x128xf32>
    %1 = vector.shape_cast %0 : vector<1x64x128xf32> to vector<64x128xf32>
    %c0_2 = arith.constant 0 : index
    %c0_3 = arith.constant 0 : index
    %c0_4 = arith.constant 0 : index
    %2 = vector.load %arg3[%c0_2, %c0_3, %c0_4] : memref<1x2x128xf32, #tpu.memory_space<vmem>>, vector<1x2x128xf32>
    %3 = vector.shape_cast %2 : vector<1x2x128xf32> to vector<2x128xf32>
    %4 = vector.extract_strided_slice %3 {offsets = [0, 0], sizes = [1, 128], strides = [1, 1]} : vector<2x128xf32> to vector<1x128xf32>
    %cst = arith.constant 1.562500e-02 : f32
    %5 = vector.broadcast %cst : f32 to vector<1x128xf32>
    %6 = arith.mulf %4, %5 : vector<1x128xf32>
    %7 = vector.extract_strided_slice %3 {offsets = [1, 0], sizes = [1, 128], strides = [1, 1]} : vector<2x128xf32> to vector<1x128xf32>
    %cst_5 = arith.constant 1.562500e-02 : f32
    %8 = vector.broadcast %cst_5 : f32 to vector<1x128xf32>
    %9 = arith.mulf %7, %8 : vector<1x128xf32>
    %10 = arith.mulf %6, %6 : vector<1x128xf32>
    %11 = arith.subf %9, %10 : vector<1x128xf32>
    %cst_6 = arith.constant 0.000000e+00 : f32
    %12 = vector.broadcast %cst_6 : f32 to vector<1x128xf32>
    %13 = arith.maximumf %11, %12 : vector<1x128xf32>
    %cst_7 = arith.constant 9.99999974E-6 : f32
    %14 = vector.broadcast %cst_7 : f32 to vector<1x128xf32>
    %15 = arith.addf %13, %14 : vector<1x128xf32>
    %16 = math.rsqrt %15 : vector<1x128xf32>
    %17 = vector.broadcast %6 : vector<1x128xf32> to vector<64x128xf32>
    %18 = arith.subf %1, %17 : vector<64x128xf32>
    %19 = vector.broadcast %16 : vector<1x128xf32> to vector<64x128xf32>
    %20 = arith.mulf %18, %19 : vector<64x128xf32>
    %cst_8 = arith.constant 0.000000e+00 : f32
    %21 = vector.broadcast %cst_8 : f32 to vector<64x128xf32>
    %22 = arith.cmpf oge, %20, %21 : vector<64x128xf32>
    %cst_9 = arith.constant 2.000000e-01 : f32
    %23 = vector.broadcast %cst_9 : f32 to vector<64x128xf32>
    %24 = arith.mulf %23, %20 : vector<64x128xf32>
    %25 = arith.select %22, %20, %24 : vector<64x128xi1>, vector<64x128xf32>
    %c0_10 = arith.constant 0 : index
    %c0_11 = arith.constant 0 : index
    %c0_12 = arith.constant 0 : index
    %26 = vector.load %arg4[%c0_10, %c0_11, %c0_12] : memref<1x64x128xf32, #tpu.memory_space<vmem>>, vector<1x64x128xf32>
    %27 = vector.shape_cast %26 : vector<1x64x128xf32> to vector<64x128xf32>
    %28 = vector.shape_cast %25 : vector<64x128xf32> to vector<1x64x128xf32>
    tpu.vector_store %arg4[%c0_10, %c0_11, %c0_12], %28 {strides = array<i32>} : memref<1x64x128xf32, #tpu.memory_space<vmem>>, vector<1x64x128xf32>,
    return
  }
  func.func @transform_0(%arg0: i32, %arg1: i32) -> (i32, i32, i32) {
    %c0_i32 = arith.constant 0 : i32
    %c0_i32_0 = arith.constant 0 : i32
    return %arg0, %arg1, %c0_i32 : i32, i32, i32
  }
  func.func @transform_1(%arg0: i32, %arg1: i32) -> (i32, i32, i32) {
    %c0_i32 = arith.constant 0 : i32
    %c0_i32_0 = arith.constant 0 : i32
    %c0_i32_1 = arith.constant 0 : i32
    return %arg0, %c0_i32, %c0_i32_0 : i32, i32, i32
  }
  func.func @transform_2(%arg0: i32, %arg1: i32) -> (i32, i32, i32) {
    %c0_i32 = arith.constant 0 : i32
    %c0_i32_0 = arith.constant 0 : i32
    return %arg0, %arg1, %c0_i32 : i32, i32, i32
  }
}

</mosaic_0001>

<llo_original>
// kernel: block_forward.3
$region0: #{block_forward.3}
  #allocation0 [shape = 'u32[]', space=smem, size = 0x4, offset = 0x4, fixed_abs, tag = 'smem constant byte address 0x4 - core index']
  #allocation1 [shape = 'u32[144,128]{1,0:T(1,128)}', space=vmem, size = 0x12000, scoped, tag = 'internal scratch']
  %s0 = inlined_call_operand.vmem [shape: f32[2,64,128], index: 0, kind: input, shape index: {}]
  %s1 = inlined_call_operand.vmem [shape: f32[2,2,128], index: 1, kind: input, shape index: {}]
  %s2 = inlined_call_operand.vmem [shape: f32[2,64,128], index: 2, kind: output, shape index: {}]
  %s3 = sld [smem:[#allocation0]]
  $region41: #{block_forward.3} parent=0
    _
  %s5 = ssub.s32 1, %s3
  %s6 = scalar_select 0, %s5, %s3
  loop: start=0, step=1, limit=4
  $region2: #{block_forward.3} parent=0 // loop_pre_header
    _
  $region3: #{block_forward.3} parent=0 // loop_header
    %s8 = sphi 0, %s12
    %p9 = scmp.ge.s32.totalorder %s8, 4
    %s15 = sphi 0, %s27
    %s16 = sphi 0, %s23
    %s17 = sphi 0, %s15
    %s18 = sphi 0, %s16
    %s19 = sphi 0, %s17
    %s20 = sphi 0, %s18
    %s32 = sphi 0, %s34
    %s35 = sphi 0, %s32
    %s36 = sphi 0, %s35
    %s52 = sphi 0, %s36
    %s58 = sphi 0, %s60
    %s61 = sphi 0, %s58
    %s62 = sphi 0, %s61
    %s78 = sphi 0, %s62
    %s86 = sphi 0, %s88
    %s89 = sphi 0, %s86
    %s90 = sphi 0, %s89
    %s106 = sphi 0, %s90
  $region4: #{block_forward.3} parent=0 // loop_header_branch
    %11 = sbr.rel (%p9) target = $region8
  $region5: #{block_forward.3} parent=0 // loop_body
    %s13 = ssub.s32 %s8, 1
    %s14 = ssub.s32 %s8, 2
    %s21 = sadd.s32 1, %s16
    %p22 = scmp.ge.s32.totalorder %s21, 1
    %s23 = scalar_select %p22, 0, %s21
    %s24 = sadd.s32 1, %s15
    %s25 = scalar_select %p22, %s24, %s15
    %p26 = scmp.ge.s32.totalorder %s25, 2
    %s27 = scalar_select %p26, 0, %s25
    %s28 = ssub.s32 %s15, %s27
    %s29 = ssub.s32 %s16, %s23
    %s30 = sor.u32 %s28, %s29
    %p31 = scmp.eq.s32.totalorder %s30, 0
    %s33 = sadd.s32 %s32, 1
    %s34 = scalar_select %p31, %s32, %s33
    %p37 = pneg %p31
    %p38 = scmp.eq.s32.totalorder %s8, 1
    %p39 = por %p37, %p38
    %p40 = scmp.ne.s32.totalorder %s32, %s35
    %p41 = scmp.eq.s32.totalorder %s8, 0
    %p42 = por %p40, %p41
    %p43 = scmp.ne.s32.totalorder %s32, %s35
    %p44 = scmp.eq.s32.totalorder %s13, 1
    %p45 = por %p43, %p44
    %p46 = scmp.ne.s32.totalorder %s35, %s36
    %p47 = scmp.eq.s32.totalorder %s13, 0
    %p48 = por %p46, %p47
    %p49 = scmp.ne.s32.totalorder %s35, %s36
    %p50 = scmp.eq.s32.totalorder %s14, 1
    %p51 = por %p49, %p50
    %p53 = scmp.ne.s32.totalorder %s36, %s52
    %p54 = scmp.eq.s32.totalorder %s14, 0
    %p55 = por %p53, %p54
    %s56 = ssub.s32 %s15, %s27
    %p57 = scmp.eq.s32.totalorder %s56, 0
    %s59 = sadd.s32 %s58, 1
    %s60 = scalar_select %p57, %s58, %s59
    %p63 = pneg %p57
    %p64 = scmp.eq.s32.totalorder %s8, 1
    %p65 = por %p63, %p64
    %p66 = scmp.ne.s32.totalorder %s58, %s61
    %p67 = scmp.eq.s32.totalorder %s8, 0
    %p68 = por %p66, %p67
    %p69 = scmp.ne.s32.totalorder %s58, %s61
    %p70 = scmp.eq.s32.totalorder %s13, 1
    %p71 = por %p69, %p70
    %p72 = scmp.ne.s32.totalorder %s61, %s62
    %p73 = scmp.eq.s32.totalorder %s13, 0
    %p74 = por %p72, %p73
    %p75 = scmp.ne.s32.totalorder %s61, %s62
    %p76 = scmp.eq.s32.totalorder %s14, 1
    %p77 = por %p75, %p76
    %p79 = scmp.ne.s32.totalorder %s62, %s78
    %p80 = scmp.eq.s32.totalorder %s14, 0
    %p81 = por %p79, %p80
    %s82 = ssub.s32 %s15, %s27
    %s83 = ssub.s32 %s16, %s23
    %s84 = sor.u32 %s82, %s83
    %p85 = scmp.eq.s32.totalorder %s84, 0
    %s87 = sadd.s32 %s86, 1
    %s88 = scalar_select %p85, %s86, %s87
    %p91 = pneg %p85
    %p92 = scmp.eq.s32.totalorder %s8, 1
    %p93 = por %p91, %p92
    %p94 = scmp.ne.s32.totalorder %s86, %s89
    %p95 = scmp.eq.s32.totalorder %s8, 0
    %p96 = por %p94, %p95
    %p97 = scmp.ne.s32.totalorder %s86, %s89
    %p98 = scmp.eq.s32.totalorder %s13, 1
    %p99 = por %p97, %p98
    %p100 = scmp.ne.s32.totalorder %s89, %s90
    %p101 = scmp.eq.s32.totalorder %s13, 0
    %p102 = por %p100, %p101
    %p103 = scmp.ne.s32.totalorder %s89, %s90
    %p104 = scmp.eq.s32.totalorder %s14, 1
    %p105 = por %p103, %p104
    %p107 = scmp.ne.s32.totalorder %s90, %s106
    %p108 = scmp.eq.s32.totalorder %s14, 0
    %p109 = por %p107, %p108
    %p110 = scmp.le.s32.totalorder 1, %s8
    %p111 = scmp.lt.s32.totalorder %s8, 3
    %p112 = pnand %p110, %p111
    %p113 = pneg %p112
    // Predicated region
    $region9: #{block_forward.3} parent=5 // pred_check
      _
    $region10: #{block_forward.3} parent=5 // pred_check_branch
      %115 = sbr.rel (%p112) target = $region12
    $region11: #{block_forward.3} parent=5 // pred_region
      %s116 = ssub.s32 %s8, 1
    $region12: #{block_forward.3} parent=5 // pred_fallthru
      _
    %p117 = scmp.lt.s32.totalorder %s8, 2
    // Predicated region
    $region13: #{block_forward.3} parent=5 // pred_check
      %p118 = pneg %p117
    $region14: #{block_forward.3} parent=5 // pred_check_branch
      %120 = sbr.rel (%p118) target = $region16
    $region15: #{block_forward.3} parent=5 // pred_region
      // Predicated region
      $region17: #{block_forward.3} parent=15 // pred_check
        %p121 = pneg %p42
      $region18: #{block_forward.3} parent=15 // pred_check_branch
        %123 = sbr.rel (%p121) target = $region20
      $region19: #{block_forward.3} parent=15 // pred_region
        %s124 = smul.u32 8, %s16
        %p125 = scmp.lt.s32.totalorder %s15, 1
        %s126 = scalar_select %p125, %s15, 1
        %p127 = scmp.lt.s32.totalorder %s124, 7
        %s128 = scalar_select %p127, %s124, 7
        %s129 = smul.addr %s126, 8
        %s130 = sadd.s32 %s128, %s129
        %s131 = smul.addr %s130, 8
        %s132 = scalar_lea.vmem %s0, %s131
        %s133 = smul.u32 8, %s16
      $region20: #{block_forward.3} parent=15 // pred_fallthru
        _
      // Predicated region
      $region21: #{block_forward.3} parent=15 // pred_check
        %p134 = pneg %p68
      $region22: #{block_forward.3} parent=15 // pred_check_branch
        %136 = sbr.rel (%p134) target = $region24
      $region23: #{block_forward.3} parent=15 // pred_region
        %p137 = scmp.lt.s32.totalorder %s15, 1
        %s138 = scalar_select %p137, %s15, 1
        %s139 = smul.addr %s138, 2
        %s140 = scalar_lea.vmem %s1, %s139
      $region24: #{block_forward.3} parent=15 // pred_fallthru
        _
    $region16: #{block_forward.3} parent=5 // pred_fallthru
      _
    %p141 = scmp.le.s32.totalorder 1, %s8
    %p142 = scmp.lt.s32.totalorder %s8, 3
    %p143 = pnand %p141, %p142
    %p144 = pneg %p143
    // Predicated region
    $region25: #{block_forward.3} parent=5 // pred_check
      _
    $region26: #{block_forward.3} parent=5 // pred_check_branch
      %146 = sbr.rel (%p143) target = $region28
    $region27: #{block_forward.3} parent=5 // pred_region
      %s147 = ssub.s32 %s8, 1
      %s148 = smul.u32 8, %s18
      %p149 = scmp.lt.s32.totalorder %s17, 1
      %s150 = scalar_select %p149, %s17, 1
      %p151 = scmp.lt.s32.totalorder %s148, 7
      %s152 = scalar_select %p151, %s148, 7
      %s153 = smul.addr %s150, 8
      %s154 = sadd.s32 %s152, %s153
      %s155 = smul.addr %s154, 8
      %s156 = scalar_lea.vmem %s0, %s155
      %p157 = pneg %p48
      %p158 = pneg %p45
      %p159 = scmp.lt.s32.totalorder %s17, 1
      %s160 = scalar_select %p159, %s17, 1
      %s161 = smul.addr %s160, 2
      %s162 = scalar_lea.vmem %s1, %s161
      %p163 = pneg %p74
      %p164 = pneg %p71
      %p165 = pneg %p102
      %p166 = pneg %p99
      %s167 = smul.u32 8, %s18
      %p168 = scmp.lt.s32.totalorder %s17, 1
      %s169 = scalar_select %p168, %s17, 1
      %p170 = scmp.lt.s32.totalorder %s167, 7
      %s171 = scalar_select %p170, %s167, 7
      %s172 = smul.addr %s169, 8
      %s173 = sadd.s32 %s171, %s172
      %s174 = smul.addr %s173, 8
      %s175 = scalar_lea.vmem %s2, %s174
      %s176 = smul.u32 8, %s18
      %p177 = scmp.lt.s32.totalorder %s17, 1
      %s178 = scalar_select %p177, %s17, 1
      %p179 = scmp.lt.s32.totalorder %s176, 7
      %s180 = scalar_select %p179, %s176, 7
      %s181 = smul.addr %s178, 8
      %s182 = sadd.s32 %s180, %s181
      %s183 = smul.addr %s182, 8
      %s184 = scalar_lea.vmem %s0, %s183
      %s185 = smul.u32 8, %s18
      %p186 = scmp.lt.s32.totalorder %s17, 1
      %s187 = scalar_select %p186, %s17, 1
      %s188 = smul.addr %s187, 2
      %s189 = scalar_lea.vmem %s1, %s188
      %s190 = smul.u32 8, %s18
      %p191 = scmp.lt.s32.totalorder %s17, 1
      %s192 = scalar_select %p191, %s17, 1
      %p193 = scmp.lt.s32.totalorder %s190, 7
      %s194 = scalar_select %p193, %s190, 7
      %s195 = smul.addr %s192, 8
      %s196 = sadd.s32 %s194, %s195
      %s197 = smul.addr %s196, 8
      %s198 = scalar_lea.vmem %s2, %s197
      %s199 = smul.u32 8, %s18
      %v200 = vld [vmem:[%s184] sm:$0xff]
      %v201 = vld [vmem:[%s184 + $0x8] sm:$0xff]
      %v202 = vld [vmem:[%s184 + $0x10] sm:$0xff]
      %v203 = vld [vmem:[%s184 + $0x18] sm:$0xff]
      %v204 = vld [vmem:[%s184 + $0x20] sm:$0xff]
      %v205 = vld [vmem:[%s184 + $0x28] sm:$0xff]
      %v206 = vld [vmem:[%s184 + $0x30] sm:$0xff]
      %v207 = vld [vmem:[%s184 + $0x38] sm:$0xff]
      %v208 = vld [vmem:[%s189] sm:$0x3]
      %v209 = vmul.f32 %v208, 0.015625
      %v210 = vmul.f32 %v209, %v209
      %v212 = vrot.slane %v210, 7
      %v214 = vsub.f32 %v209, %v212
      %v215 = vmax.f32 %v214, 0.0
      %v216 = vadd.f32 %v215, 1e-05
      %v217 = vrsqrt.pop %v216
      %v218 = vlaneseq
      %v219 = vshrl.u32 %v218, 7
      %v220 = vsub.s32 0, %v219
      %v221 = vrot.slane %v209, %v220
      %v222 = vsub.f32 %v200, %v221
      %v223 = vsub.f32 %v201, %v221
      %v224 = vsub.f32 %v202, %v221
      %v225 = vsub.f32 %v203, %v221
      %v226 = vsub.f32 %v204, %v221
      %v227 = vsub.f32 %v205, %v221
      %v228 = vsub.f32 %v206, %v221
      %v229 = vsub.f32 %v207, %v221
      %v230 = vlaneseq
      %v231 = vshrl.u32 %v230, 7
      %v232 = vsub.s32 1, %v231
      %v233 = vrot.slane %v217, %v232
      %v234 = vmul.f32 %v222, %v233
      %v235 = vmul.f32 %v223, %v233
      %v236 = vmul.f32 %v224, %v233
      %v237 = vmul.f32 %v225, %v233
      %v238 = vmul.f32 %v226, %v233
      %v239 = vmul.f32 %v227, %v233
      %v240 = vmul.f32 %v228, %v233
      %v241 = vmul.f32 %v229, %v233
      %vm242 = vcmp.ge.f32.partialorder %v234, 0.0
      %vm243 = vcmp.ge.f32.partialorder %v235, 0.0
      %vm244 = vcmp.ge.f32.partialorder %v236, 0.0
      %vm245 = vcmp.ge.f32.partialorder %v237, 0.0
      %vm246 = vcmp.ge.f32.partialorder %v238, 0.0
      %vm247 = vcmp.ge.f32.partialorder %v239, 0.0
      %vm248 = vcmp.ge.f32.partialorder %v240, 0.0
      %vm249 = vcmp.ge.f32.partialorder %v241, 0.0
      %v250 = vmul.f32 %v234, 0.2
      %v251 = vmul.f32 %v235, 0.2
      %v252 = vmul.f32 %v236, 0.2
      %v253 = vmul.f32 %v237, 0.2
      %v254 = vmul.f32 %v238, 0.2
      %v255 = vmul.f32 %v239, 0.2
      %v256 = vmul.f32 %v240, 0.2
      %v257 = vmul.f32 %v241, 0.2
      %v258 = vsel %vm242, %v234, %v250
      %v259 = vsel %vm243, %v235, %v251
      %v260 = vsel %vm244, %v236, %v252
      %v261 = vsel %vm245, %v237, %v253
      %v262 = vsel %vm246, %v238, %v254
      %v263 = vsel %vm247, %v239, %v255
      %v264 = vsel %vm248, %v240, %v256
      %v265 = vsel %vm249, %v241, %v257
      %266 = vst [vmem:[%s198] sm:$0xff] %v258
      %267 = vst [vmem:[%s198 + $0x8] sm:$0xff] %v259
      %268 = vst [vmem:[%s198 + $0x10] sm:$0xff] %v260
      %269 = vst [vmem:[%s198 + $0x18] sm:$0xff] %v261
      %270 = vst [vmem:[%s198 + $0x20] sm:$0xff] %v262
      %271 = vst [vmem:[%s198 + $0x28] sm:$0xff] %v263
      %272 = vst [vmem:[%s198 + $0x30] sm:$0xff] %v264
      %273 = vst [vmem:[%s198 + $0x38] sm:$0xff] %v265
      %s274 = smul.u32 8, %s18
      %p275 = scmp.lt.s32.totalorder %s17, 1
      %s276 = scalar_select %p275, %s17, 1
      %p277 = scmp.lt.s32.totalorder %s274, 7
      %s278 = scalar_select %p277, %s274, 7
      %s279 = smul.addr %s276, 8
      %s280 = sadd.s32 %s278, %s279
      %s281 = smul.addr %s280, 8
      %s282 = scalar_lea.vmem %s2, %s281
      // Predicated region
      $region29: #{block_forward.3} parent=27 // pred_check
        %p283 = pneg %p99
      $region30: #{block_forward.3} parent=27 // pred_check_branch
        %285 = sbr.rel (%p283) target = $region32
      $region31: #{block_forward.3} parent=27 // pred_region
        %s286 = smul.u32 8, %s18
      $region32: #{block_forward.3} parent=27 // pred_fallthru
        _
    $region28: #{block_forward.3} parent=5 // pred_fallthru
      _
    %p287 = scmp.le.s32.totalorder 2, %s8
    // Predicated region
    $region33: #{block_forward.3} parent=5 // pred_check
      %p288 = pneg %p287
    $region34: #{block_forward.3} parent=5 // pred_check_branch
      %290 = sbr.rel (%p288) target = $region36
    $region35: #{block_forward.3} parent=5 // pred_region
      %s291 = ssub.s32 %s8, 2
      // Predicated region
      $region37: #{block_forward.3} parent=35 // pred_check
        %p292 = pneg %p105
      $region38: #{block_forward.3} parent=35 // pred_check_branch
        %294 = sbr.rel (%p292) target = $region40
      $region39: #{block_forward.3} parent=35 // pred_region
        %s295 = smul.u32 8, %s20
        %p296 = scmp.lt.s32.totalorder %s19, 1
        %s297 = scalar_select %p296, %s19, 1
        %p298 = scmp.lt.s32.totalorder %s295, 7
        %s299 = scalar_select %p298, %s295, 7
        %s300 = smul.addr %s297, 8
        %s301 = sadd.s32 %s299, %s300
        %s302 = smul.addr %s301, 8
        %s303 = scalar_lea.vmem %s2, %s302
      $region40: #{block_forward.3} parent=35 // pred_fallthru
        _
    $region36: #{block_forward.3} parent=5 // pred_fallthru
      _
  $region6: #{block_forward.3} parent=0 // loop_footer
    %s12 = sadd.s32 1, %s8
  $region7: #{block_forward.3} parent=0 // loop_footer_branch
    %7 = sbr.rel target = $region3
  $region8: #{block_forward.3} parent=0 // loop_exit
    _

// kernel: block_forward.2
$region0: #{block_forward.2}
  #allocation0 [shape = 'u32[]', space=smem, size = 0x4, offset = 0x4, fixed_abs, tag = 'smem constant byte address 0x4 - core index']
  #allocation1 [shape = 'u32[144,128]{1,0:T(1,128)}', space=vmem, size = 0x12000, scoped, tag = 'internal scratch']
  %s0 = inlined_call_operand.vmem [shape: bf16[2,64,128], index: 0, kind: input, shape index: {}]
  %s1 = inlined_call_operand.vmem [shape: bf16[128,128], index: 1, kind: input, shape index: {}]
  %s2 = inlined_call_operand.vmem [shape: f32[2,64,128], index: 2, kind: output, shape index: {0}]
  %s3 = inlined_call_operand.vmem [shape: f32[2,2,128], index: 3, kind: output, shape index: {1}]
  %4 = xla_tuple %s2, %s3
  %s5 = sld [smem:[#allocation0]]
  $region57: #{block_forward.2} parent=0
    _
  %s7 = ssub.s32 1, %s5
  %s8 = scalar_select 0, %s7, %s5
  loop: start=0, step=1, limit=4
  $region2: #{block_forward.2} parent=0 // loop_pre_header
    _
  $region3: #{block_forward.2} parent=0 // loop_header
    %s10 = sphi 0, %s14
    %p11 = scmp.ge.s32.totalorder %s10, 4
    %s17 = sphi 0, %s29
    %s18 = sphi 0, %s25
    %s19 = sphi 0, %s17
    %s20 = sphi 0, %s18
    %s21 = sphi 0, %s19
    %s22 = sphi 0, %s20
    %s34 = sphi 0, %s36
    %s37 = sphi 0, %s34
    %s38 = sphi 0, %s37
    %s54 = sphi 0, %s38
    %s58 = sphi 0, %s58
    %s60 = sphi 0, %s58
    %s61 = sphi 0, %s60
    %s75 = sphi 0, %s61
    %s83 = sphi 0, %s85
    %s86 = sphi 0, %s83
    %s87 = sphi 0, %s86
    %s103 = sphi 0, %s87
    %s109 = sphi 0, %s111
    %s112 = sphi 0, %s109
    %s113 = sphi 0, %s112
    %s129 = sphi 0, %s113
  $region4: #{block_forward.2} parent=0 // loop_header_branch
    %13 = sbr.rel (%p11) target = $region8
  $region5: #{block_forward.2} parent=0 // loop_body
    %s15 = ssub.s32 %s10, 1
    %s16 = ssub.s32 %s10, 2
    %s23 = sadd.s32 1, %s18
    %p24 = scmp.ge.s32.totalorder %s23, 1
    %s25 = scalar_select %p24, 0, %s23
    %s26 = sadd.s32 1, %s17
    %s27 = scalar_select %p24, %s26, %s17
    %p28 = scmp.ge.s32.totalorder %s27, 2
    %s29 = scalar_select %p28, 0, %s27
    %s30 = ssub.s32 %s17, %s29
    %s31 = ssub.s32 %s18, %s25
    %s32 = sor.u32 %s30, %s31
    %p33 = scmp.eq.s32.totalorder %s32, 0
    %s35 = sadd.s32 %s34, 1
    %s36 = scalar_select %p33, %s34, %s35
    %p39 = pneg %p33
    %p40 = scmp.eq.s32.totalorder %s10, 1
    %p41 = por %p39, %p40
    %p42 = scmp.ne.s32.totalorder %s34, %s37
    %p43 = scmp.eq.s32.totalorder %s10, 0
    %p44 = por %p42, %p43
    %p45 = scmp.ne.s32.totalorder %s34, %s37
    %p46 = scmp.eq.s32.totalorder %s15, 1
    %p47 = por %p45, %p46
    %p48 = scmp.ne.s32.totalorder %s37, %s38
    %p49 = scmp.eq.s32.totalorder %s15, 0
    %p50 = por %p48, %p49
    %p51 = scmp.ne.s32.totalorder %s37, %s38
    %p52 = scmp.eq.s32.totalorder %s16, 1
    %p53 = por %p51, %p52
    %p55 = scmp.ne.s32.totalorder %s38, %s54
    %p56 = scmp.eq.s32.totalorder %s16, 0
    %p57 = por %p55, %p56
    %s59 = sadd.s32 %s58, 1
    %p62 = scmp.eq.s32.totalorder %s10, 1
    %p63 = scmp.ne.s32.totalorder %s58, %s60
    %p64 = scmp.eq.s32.totalorder %s10, 0
    %p65 = por %p63, %p64
    %p66 = scmp.ne.s32.totalorder %s58, %s60
    %p67 = scmp.eq.s32.totalorder %s15, 1
    %p68 = por %p66, %p67
    %p69 = scmp.ne.s32.totalorder %s60, %s61
    %p70 = scmp.eq.s32.totalorder %s15, 0
    %p71 = por %p69, %p70
    %p72 = scmp.ne.s32.totalorder %s60, %s61
    %p73 = scmp.eq.s32.totalorder %s16, 1
    %p74 = por %p72, %p73
    %p76 = scmp.ne.s32.totalorder %s61, %s75
    %p77 = scmp.eq.s32.totalorder %s16, 0
    %p78 = por %p76, %p77
    %s79 = ssub.s32 %s17, %s29
    %s80 = ssub.s32 %s18, %s25
    %s81 = sor.u32 %s79, %s80
    %p82 = scmp.eq.s32.totalorder %s81, 0
    %s84 = sadd.s32 %s83, 1
    %s85 = scalar_select %p82, %s83, %s84
    %p88 = pneg %p82
    %p89 = scmp.eq.s32.totalorder %s10, 1
    %p90 = por %p88, %p89
    %p91 = scmp.ne.s32.totalorder %s83, %s86
    %p92 = scmp.eq.s32.totalorder %s10, 0
    %p93 = por %p91, %p92
    %p94 = scmp.ne.s32.totalorder %s83, %s86
    %p95 = scmp.eq.s32.totalorder %s15, 1
    %p96 = por %p94, %p95
    %p97 = scmp.ne.s32.totalorder %s86, %s87
    %p98 = scmp.eq.s32.totalorder %s15, 0
    %p99 = por %p97, %p98
    %p100 = scmp.ne.s32.totalorder %s86, %s87
    %p101 = scmp.eq.s32.totalorder %s16, 1
    %p102 = por %p100, %p101
    %p104 = scmp.ne.s32.totalorder %s87, %s103
    %p105 = scmp.eq.s32.totalorder %s16, 0
    %p106 = por %p104, %p105
    %s107 = ssub.s32 %s17, %s29
    %p108 = scmp.eq.s32.totalorder %s107, 0
    %s110 = sadd.s32 %s109, 1
    %s111 = scalar_select %p108, %s109, %s110
    %p114 = pneg %p108
    %p115 = scmp.eq.s32.totalorder %s10, 1
    %p116 = por %p114, %p115
    %p117 = scmp.ne.s32.totalorder %s109, %s112
    %p118 = scmp.eq.s32.totalorder %s10, 0
    %p119 = por %p117, %p118
    %p120 = scmp.ne.s32.totalorder %s109, %s112
    %p121 = scmp.eq.s32.totalorder %s15, 1
    %p122 = por %p120, %p121
    %p123 = scmp.ne.s32.totalorder %s112, %s113
    %p124 = scmp.eq.s32.totalorder %s15, 0
    %p125 = por %p123, %p124
    %p126 = scmp.ne.s32.totalorder %s112, %s113
    %p127 = scmp.eq.s32.totalorder %s16, 1
    %p128 = por %p126, %p127
    %p130 = scmp.ne.s32.totalorder %s113, %s129
    %p131 = scmp.eq.s32.totalorder %s16, 0
    %p132 = por %p130, %p131
    %p133 = scmp.le.s32.totalorder 1, %s10
    %p134 = scmp.lt.s32.totalorder %s10, 3
    %p135 = pnand %p133, %p134
    %p136 = pneg %p135
    // Predicated region
    $region9: #{block_forward.2} parent=5 // pred_check
      _
    $region10: #{block_forward.2} parent=5 // pred_check_branch
      %138 = sbr.rel (%p135) target = $region12
    $region11: #{block_forward.2} parent=5 // pred_region
      %s139 = ssub.s32 %s10, 1
      // Predicated region
      $region13: #{block_forward.2} parent=11 // pred_check
        %p140 = pneg %p71
      $region14: #{block_forward.2} parent=11 // pred_check_branch
        %142 = sbr.rel (%p140) target = $region16
      $region15: #{block_forward.2} parent=11 // pred_region
        _
      $region16: #{block_forward.2} parent=11 // pred_fallthru
        _
    $region12: #{block_forward.2} parent=5 // pred_fallthru
      _
    %p143 = scmp.lt.s32.totalorder %s10, 2
    // Predicated region
    $region17: #{block_forward.2} parent=5 // pred_check
      %p144 = pneg %p143
    $region18: #{block_forward.2} parent=5 // pred_check_branch
      %146 = sbr.rel (%p144) target = $region20
    $region19: #{block_forward.2} parent=5 // pred_region
      // Predicated region
      $region21: #{block_forward.2} parent=19 // pred_check
        %p147 = pneg %p44
      $region22: #{block_forward.2} parent=19 // pred_check_branch
        %149 = sbr.rel (%p147) target = $region24
      $region23: #{block_forward.2} parent=19 // pred_region
        %s150 = smul.u32 8, %s18
        %p151 = scmp.lt.s32.totalorder %s17, 1
        %s152 = scalar_select %p151, %s17, 1
        %p153 = scmp.lt.s32.totalorder %s150, 7
        %s154 = scalar_select %p153, %s150, 7
        %s155 = smul.addr %s152, 8
        %s156 = sadd.s32 %s154, %s155
        %s157 = smul.addr %s156, 4
        %s158 = scalar_lea.vmem %s0, %s157
        %s159 = smul.u32 8, %s18
      $region24: #{block_forward.2} parent=19 // pred_fallthru
        _
    $region20: #{block_forward.2} parent=5 // pred_fallthru
      _
    %p160 = scmp.le.s32.totalorder 1, %s10
    %p161 = scmp.lt.s32.totalorder %s10, 3
    %p162 = pnand %p160, %p161
    %p163 = pneg %p162
    // Predicated region
    $region25: #{block_forward.2} parent=5 // pred_check
      _
    $region26: #{block_forward.2} parent=5 // pred_check_branch
      %165 = sbr.rel (%p162) target = $region28
    $region27: #{block_forward.2} parent=5 // pred_region
      %s166 = ssub.s32 %s10, 1
      %s167 = smul.u32 8, %s20
      %p168 = scmp.lt.s32.totalorder %s19, 1
      %s169 = scalar_select %p168, %s19, 1
      %p170 = scmp.lt.s32.totalorder %s167, 7
      %s171 = scalar_select %p170, %s167, 7
      %s172 = smul.addr %s169, 8
      %s173 = sadd.s32 %s171, %s172
      %s174 = smul.addr %s173, 4
      %s175 = scalar_lea.vmem %s0, %s174
      %p176 = pneg %p50
      %p177 = pneg %p47
      %p178 = pneg %p71
      %p179 = pneg %p68
      %p180 = pneg %p99
      %p181 = pneg %p96
      %s182 = smul.u32 8, %s20
      %p183 = scmp.lt.s32.totalorder %s19, 1
      %s184 = scalar_select %p183, %s19, 1
      %p185 = scmp.lt.s32.totalorder %s182, 7
      %s186 = scalar_select %p185, %s182, 7
      %s187 = smul.addr %s184, 8
      %s188 = sadd.s32 %s186, %s187
      %s189 = smul.addr %s188, 8
      %s190 = scalar_lea.vmem %s2, %s189
      %p191 = pneg %p125
      %p192 = pneg %p122
      %p193 = scmp.lt.s32.totalorder %s19, 1
      %s194 = scalar_select %p193, %s19, 1
      %s195 = smul.addr %s194, 2
      %s196 = scalar_lea.vmem %s3, %s195
      %s197 = smul.u32 8, %s20
      %p198 = scmp.lt.s32.totalorder %s19, 1
      %s199 = scalar_select %p198, %s19, 1
      %p200 = scmp.lt.s32.totalorder %s197, 7
      %s201 = scalar_select %p200, %s197, 7
      %s202 = smul.addr %s199, 8
      %s203 = sadd.s32 %s201, %s202
      %s204 = smul.addr %s203, 4
      %s205 = scalar_lea.vmem %s0, %s204
      %s206 = smul.u32 8, %s20
      %s207 = smul.u32 8, %s20
      %p208 = scmp.lt.s32.totalorder %s19, 1
      %s209 = scalar_select %p208, %s19, 1
      %p210 = scmp.lt.s32.totalorder %s207, 7
      %s211 = scalar_select %p210, %s207, 7
      %s212 = smul.addr %s209, 8
      %s213 = sadd.s32 %s211, %s212
      %s214 = smul.addr %s213, 8
      %s215 = scalar_lea.vmem %s2, %s214
      %s216 = smul.u32 8, %s20
      %p217 = scmp.lt.s32.totalorder %s19, 1
      %s218 = scalar_select %p217, %s19, 1
      %s219 = smul.addr %s218, 2
      %s220 = scalar_lea.vmem %s3, %s219
      %v222 = vld [vmem:[%s205] sm:$0xf]
      %v223 = vld [vmem:[%s205 + $0x4] sm:$0xf]
      %v224 = vld [vmem:[%s205 + $0x8] sm:$0xf]
      %v225 = vld [vmem:[%s205 + $0xc] sm:$0xf]
      %v226 = vld [vmem:[%s205 + $0x10] sm:$0xf]
      %v227 = vld [vmem:[%s205 + $0x14] sm:$0xf]
      %v228 = vld [vmem:[%s205 + $0x18] sm:$0xf]
      %v229 = vld [vmem:[%s205 + $0x1c] sm:$0xf]
      %v230 = vld [vmem:[%s1] sm:$0xf]
      %v231 = vld [vmem:[%s1 + $0x4] sm:$0xf]
      %v232 = vld [vmem:[%s1 + $0x8] sm:$0xf]
      %v233 = vld [vmem:[%s1 + $0xc] sm:$0xf]
      %v234 = vld [vmem:[%s1 + $0x10] sm:$0xf]
      %v235 = vld [vmem:[%s1 + $0x14] sm:$0xf]
      %v236 = vld [vmem:[%s1 + $0x18] sm:$0xf]
      %v237 = vld [vmem:[%s1 + $0x1c] sm:$0xf]
      %v238 = vld [vmem:[%s1 + $0x20] sm:$0xf]
      %v239 = vld [vmem:[%s1 + $0x24] sm:$0xf]
      %v240 = vld [vmem:[%s1 + $0x28] sm:$0xf]
      %v241 = vld [vmem:[%s1 + $0x2c] sm:$0xf]
      %v242 = vld [vmem:[%s1 + $0x30] sm:$0xf]
      %v243 = vld [vmem:[%s1 + $0x34] sm:$0xf]
      %v244 = vld [vmem:[%s1 + $0x38] sm:$0xf]
      %v245 = vld [vmem:[%s1 + $0x3c] sm:$0xf]
      %v254 = vunpack.c.l.b16 %v222
      %v255 = vunpack.c.l.b16 %v223
      %v256 = vunpack.c.l.b16 %v224
      %v257 = vunpack.c.l.b16 %v225
      %v258 = vunpack.c.l.b16 %v226
      %v259 = vunpack.c.l.b16 %v227
      %v260 = vunpack.c.l.b16 %v228
      %v261 = vunpack.c.l.b16 %v229
      %v262 = vpack.c.b16 %v255, %v254
      %v263 = vpack.c.b16 %v257, %v256
      %v264 = vpack.c.b16 %v259, %v258
      %v265 = vpack.c.b16 %v261, %v260
      %v286 = vunpack.c.l.b16 %v230
      %v287 = vunpack.c.l.b16 %v231
      %v288 = vunpack.c.l.b16 %v232
      %v289 = vunpack.c.l.b16 %v233
      %v290 = vunpack.c.l.b16 %v234
      %v291 = vunpack.c.l.b16 %v235
      %v292 = vunpack.c.l.b16 %v236
      %v293 = vunpack.c.l.b16 %v237
      %v294 = vunpack.c.l.b16 %v238
      %v295 = vunpack.c.l.b16 %v239
      %v296 = vunpack.c.l.b16 %v240
      %v297 = vunpack.c.l.b16 %v241
      %v298 = vunpack.c.l.b16 %v242
      %v299 = vunpack.c.l.b16 %v243
      %v300 = vunpack.c.l.b16 %v244
      %v301 = vunpack.c.l.b16 %v245
      %v302 = vpack.c.b16 %v287, %v286
      %v303 = vpack.c.b16 %v289, %v288
      %v304 = vpack.c.b16 %v291, %v290
      %v305 = vpack.c.b16 %v293, %v292
      %v306 = vpack.c.b16 %v295, %v294
      %v307 = vpack.c.b16 %v297, %v296
      %v308 = vpack.c.b16 %v299, %v298
      %v309 = vpack.c.b16 %v301, %v300
      %318 = vmatprep.subr.bf16.mxu0 0
      %319 = vmatpush1.bf16.msra.mxu0 %v302
      %320 = vmatprep.subr.bf16.mxu0 0
      %321 = vmatpush1.bf16.msra.mxu0 %v303
      %322 = vmatprep.subr.bf16.mxu0 0
      %323 = vmatpush1.bf16.msra.mxu0 %v304
      %324 = vmatprep.subr.bf16.mxu0 0
      %325 = vmatpush1.bf16.msra.mxu0 %v305
      %326 = vmatprep.subr.bf16.mxu0 0
      %327 = vmatpush1.bf16.msra.mxu0 %v306
      %328 = vmatprep.subr.bf16.mxu0 0
      %329 = vmatpush1.bf16.msra.mxu0 %v307
      %330 = vmatprep.subr.bf16.mxu0 0
      %331 = vmatpush1.bf16.msra.mxu0 %v308
      %332 = vmatprep.subr.bf16.mxu0 0
      %333 = vmatpush1.bf16.msra.mxu0 %v309
      %334 = vmatprep.subr.bf16.mxu0 0
      %335 = vmatpush1.bf16.msra.mxu0 0
      %336 = vmatprep.subr.bf16.mxu0 0
      %337 = vmatpush1.bf16.msra.mxu0 0
      %338 = vmatprep.subr.bf16.mxu0 0
      %339 = vmatpush1.bf16.msra.mxu0 0
      %340 = vmatprep.subr.bf16.mxu0 0
      %341 = vmatpush1.bf16.msra.mxu0 0
      %342 = vmatprep.subr.bf16.mxu0 0
      %343 = vmatpush1.bf16.msra.mxu0 0
      %344 = vmatprep.subr.bf16.mxu0 0
      %345 = vmatpush1.bf16.msra.mxu0 0
      %346 = vmatprep.subr.bf16.mxu0 0
      %347 = vmatpush1.bf16.msra.mxu0 0
      %348 = vmatprep.subr.bf16.mxu0 0
      %349 = vmatpush1.bf16.msra.mxu0 0
      %350 = vmatprep.mubr.bf16.mxu0 0
      %351 = vmatmul.mubr.bf16.gmra.mrb[0].mxu0 %v262
      %v352 = vpop.f32.mrb[0].mxu0
      %v353 = vadd.f32 0.0, %v352
      %v354 = vpop.f32.mrb[0].mxu0
      %v355 = vpop.f32.mrb[0].mxu0
      %v356 = vadd.f32 0.0, %v355
      %v357 = vpop.f32.mrb[0].mxu0
      %358 = vmatprep.mubr.bf16.mxu0 0
      %359 = vmatmul.mubr.bf16.gmra.mrb[0].mxu0 %v263
      %v360 = vpop.f32.mrb[0].mxu0
      %v361 = vadd.f32 0.0, %v360
      %v362 = vpop.f32.mrb[0].mxu0
      %v363 = vpop.f32.mrb[0].mxu0
      %v364 = vadd.f32 0.0, %v363
      %v365 = vpop.f32.mrb[0].mxu0
      %366 = vmatprep.mubr.bf16.mxu0 0
      %367 = vmatmul.mubr.bf16.gmra.mrb[0].mxu0 %v264
      %v368 = vpop.f32.mrb[0].mxu0
      %v369 = vadd.f32 0.0, %v368
      %v370 = vpop.f32.mrb[0].mxu0
      %v371 = vpop.f32.mrb[0].mxu0
      %v372 = vadd.f32 0.0, %v371
      %v373 = vpop.f32.mrb[0].mxu0
      %374 = vmatprep.mubr.bf16.mxu0 0
      %375 = vmatmul.mubr.bf16.gmra.mrb[0].mxu0 %v265
      %v376 = vpop.f32.mrb[0].mxu0
      %v377 = vadd.f32 0.0, %v376
      %v378 = vpop.f32.mrb[0].mxu0
      %v379 = vpop.f32.mrb[0].mxu0
      %v380 = vadd.f32 0.0, %v379
      %v381 = vpop.f32.mrb[0].mxu0
      %382 = vdwg.mxu0
      %383 = vst [vmem:[%s215] sm:$0xff] %v353
      %384 = vst [vmem:[%s215 + $0x8] sm:$0xff] %v356
      %385 = vst [vmem:[%s215 + $0x10] sm:$0xff] %v361
      %386 = vst [vmem:[%s215 + $0x18] sm:$0xff] %v364
      %387 = vst [vmem:[%s215 + $0x20] sm:$0xff] %v369
      %388 = vst [vmem:[%s215 + $0x28] sm:$0xff] %v372
      %389 = vst [vmem:[%s215 + $0x30] sm:$0xff] %v377
      %390 = vst [vmem:[%s215 + $0x38] sm:$0xff] %v380
      %v391 = vadd.f32 %v353, %v356
      %v392 = vadd.f32 %v391, %v361
      %v393 = vadd.f32 %v392, %v364
      %v394 = vadd.f32 %v393, %v369
      %v395 = vadd.f32 %v394, %v372
      %v396 = vadd.f32 %v395, %v377
      %v397 = vadd.f32 %v396, %v380
      %v398 = vrot.slane %v397, 4
      %v399 = vadd.f32 %v397, %v398
      %v400 = vrot.slane %v399, 2
      %v401 = vadd.f32 %v399, %v400
      %v402 = vrot.slane %v401, 1
      %v403 = vadd.f32 %v401, %v402
      %v404 = vmul.f32 %v353, %v353
      %v405 = vmul.f32 %v356, %v356
      %v406 = vmul.f32 %v361, %v361
      %v407 = vmul.f32 %v364, %v364
      %v408 = vmul.f32 %v369, %v369
      %v409 = vmul.f32 %v372, %v372
      %v410 = vmul.f32 %v377, %v377
      %v411 = vmul.f32 %v380, %v380
      %v412 = vadd.f32 %v404, %v405
      %v413 = vadd.f32 %v412, %v406
      %v414 = vadd.f32 %v413, %v407
      %v415 = vadd.f32 %v414, %v408
      %v416 = vadd.f32 %v415, %v409
      %v417 = vadd.f32 %v416, %v410
      %v418 = vadd.f32 %v417, %v411
      %v419 = vrot.slane %v418, 4
      %v420 = vadd.f32 %v418, %v419
      %v421 = vrot.slane %v420, 2
      %v422 = vadd.f32 %v420, %v421
      %v423 = vrot.slane %v422, 1
      %v424 = vadd.f32 %v422, %v423
      %vm425 = vcmask 1040384
      %v426 = vsel %vm425, %v403, %v424
      %p427 = scmp.eq.s32.totalorder %s20, 0
      // Predicated region
      $region29: #{block_forward.2} parent=27 // pred_check
        %p428 = pneg %p427
      $region30: #{block_forward.2} parent=27 // pred_check_branch
        %430 = sbr.rel (%p428) target = $region32
      $region31: #{block_forward.2} parent=27 // pred_region
        %431 = vst [vmem:[%s220] sm:$0x3] %v426
      $region32: #{block_forward.2} parent=27 // pred_fallthru
        _
      %p432 = scmp.ne.s32.totalorder %s20, 0
      // Predicated region
      $region33: #{block_forward.2} parent=27 // pred_check
        %p433 = pneg %p432
      $region34: #{block_forward.2} parent=27 // pred_check_branch
        %435 = sbr.rel (%p433) target = $region36
      $region35: #{block_forward.2} parent=27 // pred_region
        %v436 = vld [vmem:[%s220] sm:$0x3]
        %v437 = vadd.f32 %v436, %v426
        %438 = vst [vmem:[%s220] sm:$0x3] %v437
      $region36: #{block_forward.2} parent=27 // pred_fallthru
        _
      %s439 = smul.u32 8, %s20
      %p440 = scmp.lt.s32.totalorder %s19, 1
      %s441 = scalar_select %p440, %s19, 1
      %p442 = scmp.lt.s32.totalorder %s439, 7
      %s443 = scalar_select %p442, %s439, 7
      %s444 = smul.addr %s441, 8
      %s445 = sadd.s32 %s443, %s444
      %s446 = smul.addr %s445, 8
      %s447 = scalar_lea.vmem %s2, %s446
      %p448 = scmp.lt.s32.totalorder %s19, 1
      %s449 = scalar_select %p448, %s19, 1
      %s450 = smul.addr %s449, 2
      %s451 = scalar_lea.vmem %s3, %s450
      // Predicated region
      $region37: #{block_forward.2} parent=27 // pred_check
        %p452 = pneg %p96
      $region38: #{block_forward.2} parent=27 // pred_check_branch
        %454 = sbr.rel (%p452) target = $region40
      $region39: #{block_forward.2} parent=27 // pred_region
        %s455 = smul.u32 8, %s20
      $region40: #{block_forward.2} parent=27 // pred_fallthru
        _
      // Predicated region
      $region41: #{block_forward.2} parent=27 // pred_check
        %p456 = pneg %p122
      $region42: #{block_forward.2} parent=27 // pred_check_branch
        %458 = sbr.rel (%p456) target = $region44
      $region43: #{block_forward.2} parent=27 // pred_region
        _
      $region44: #{block_forward.2} parent=27 // pred_fallthru
        _
    $region28: #{block_forward.2} parent=5 // pred_fallthru
      _
    %p459 = scmp.le.s32.totalorder 2, %s10
    // Predicated region
    $region45: #{block_forward.2} parent=5 // pred_check
      %p460 = pneg %p459
    $region46: #{block_forward.2} parent=5 // pred_check_branch
      %462 = sbr.rel (%p460) target = $region48
    $region47: #{block_forward.2} parent=5 // pred_region
      %s463 = ssub.s32 %s10, 2
      // Predicated region
      $region49: #{block_forward.2} parent=47 // pred_check
        %p464 = pneg %p102
      $region50: #{block_forward.2} parent=47 // pred_check_branch
        %466 = sbr.rel (%p464) target = $region52
      $region51: #{block_forward.2} parent=47 // pred_region
        %s467 = smul.u32 8, %s22
        %p468 = scmp.lt.s32.totalorder %s21, 1
        %s469 = scalar_select %p468, %s21, 1
        %p470 = scmp.lt.s32.totalorder %s467, 7
        %s471 = scalar_select %p470, %s467, 7
        %s472 = smul.addr %s469, 8
        %s473 = sadd.s32 %s471, %s472
        %s474 = smul.addr %s473, 8
        %s475 = scalar_lea.vmem %s2, %s474
      $region52: #{block_forward.2} parent=47 // pred_fallthru
        _
      // Predicated region
      $region53: #{block_forward.2} parent=47 // pred_check
        %p476 = pneg %p128
      $region54: #{block_forward.2} parent=47 // pred_check_branch
        %478 = sbr.rel (%p476) target = $region56
      $region55: #{block_forward.2} parent=47 // pred_region
        %p479 = scmp.lt.s32.totalorder %s21, 1
        %s480 = scalar_select %p479, %s21, 1
        %s481 = smul.addr %s480, 2
        %s482 = scalar_lea.vmem %s3, %s481
      $region56: #{block_forward.2} parent=47 // pred_fallthru
        _
    $region48: #{block_forward.2} parent=5 // pred_fallthru
      _
  $region6: #{block_forward.2} parent=0 // loop_footer
    %s14 = sadd.s32 1, %s10
  $region7: #{block_forward.2} parent=0 // loop_footer_branch
    %9 = sbr.rel target = $region3
  $region8: #{block_forward.2} parent=0 // loop_exit
    _

</llo_original>
